<compile_context>
chip_gen: v5e
topology: v5e:2x2
jax: 0.10.0
libtpu: 0.0.40
codegen_flags: <defaults>
</compile_context>

<pallas_src>
import jax
import jax.numpy as jnp
from jax import lax
from jax.experimental import pallas as pl
from jax.experimental.pallas import tpu as pltpu


def _node_attention_kernel(v_ref, w_ref, b_ref, o_ref):
    # v_ref: (Bb, N, F)   w_ref: (F, M)   b_ref: (1, M)   o_ref: (Bb, M*F)
    Bb, N, F = v_ref.shape
    M = w_ref.shape[1]

    v = v_ref[...]                                            # (Bb, N, F)

    # Linear folded into a single large MXU matmul for the whole block:
    #   (Bb*N, F) @ (F, M) -> (Bb*N, M)
    s = jnp.dot(v.reshape(Bb * N, F), w_ref[...],
                preferred_element_type=jnp.float32)
    # Bias broadcast over (Bb, N).  (Note: bias is constant along the softmax
    # axis so it cancels mathematically, but it is kept for exact parity with
    # the torch Linear + softmax formulation.)
    s = s.reshape(Bb, N, M) + b_ref[...]

    # Softmax over the node axis (torch dim=1).
    m = jnp.max(s, axis=1, keepdims=True)                     # (Bb, 1, M)
    e = jnp.exp(s - m)                                        # (Bb, N, M)
    denom = jnp.sum(e, axis=1, keepdims=True)                 # (Bb, 1, M)
    p = e * pl.reciprocal(denom, approx=True)                 # (Bb, N, M)

    # Batched P^T @ V without materializing a transpose:
    # contract the node axis -> (Bb, M, F).
    out = lax.dot_general(
        p, v,
        dimension_numbers=(((1,), (1,)), ((0,), (0,))),
        preferred_element_type=jnp.float32)

    # Lane-dense store: M*F lanes per row (>= 128 for typical sizes).
    o_ref[...] = out.reshape(Bb, M * F).astype(o_ref.dtype)


def _pick_block_b(B, target=8):
    """Largest divisor of B that is <= target (keeps blocks exact)."""
    bb = min(B, target)
    while B % bb:
        bb -= 1
    return bb


def make_node_attention_output(V, weight, bias, *, block_b=None):
    """V: (B, N, F_in); weight: (M, F_in) (torch layout); bias: (M,)."""
    B, N, F_in = V.shape
    M = weight.shape[0]

    if block_b is None:
        block_b = _pick_block_b(B)
    assert B % block_b == 0, "block_b must divide B"
    num_blocks = B // block_b

    w_t = weight.T                      # (F_in, M) — MXU-friendly orientation
    b2 = bias.reshape(1, M)             # (1, M)

    out = pl.pallas_call(
        _node_attention_kernel,
        out_shape=jax.ShapeDtypeStruct((B, M * F_in), V.dtype),
        grid_spec=pltpu.PrefetchScalarGridSpec(
            num_scalar_prefetch=0,
            grid=(num_blocks,),
            in_specs=[
                pl.BlockSpec((block_b, N, F_in), lambda b: (b, 0, 0)),  # V block
                pl.BlockSpec((F_in, M), lambda b: (0, 0)),              # weight
                pl.BlockSpec((1, M), lambda b: (0, 0)),                 # bias
            ],
            out_specs=pl.BlockSpec((block_b, M * F_in), lambda b: (b, 0)),
        ),
        compiler_params=pltpu.CompilerParams(
            dimension_semantics=("parallel",)),
    )(V, w_t, b2)

    # Free layout plumbing outside the kernel: (B, M*F) -> (B*M, F).
    return out.reshape(B * M, F_in)


if __name__ == "__main__":
    # Small shapes consistent with the module's node-attention pooling.
    B, N, F_in, M = 2, 16, 32, 8        # batch, nodes, input_feature, outputs

    key = jax.random.PRNGKey(0)
    k_v, k_w, k_b = jax.random.split(key, 3)

    V = jax.random.normal(k_v, (B, N, F_in), dtype=jnp.float32)
    # "Linear(F_in -> M)" parameters in torch layout: (M, F_in), (M,)
    bound = 1.0 / (F_in ** 0.5)
    weight = jax.random.uniform(k_w, (M, F_in), minval=-bound, maxval=bound,
                                dtype=jnp.float32)
    bias = jax.random.uniform(k_b, (M,), minval=-bound, maxval=bound,
                              dtype=jnp.float32)

    out = make_node_attention_output(V, weight, bias)
    out = jax.block_until_ready(out)

    # Pure-JAX reference check (same math, outside Pallas).
    s = jnp.einsum("bnf,mf->bnm", V, weight) + bias
    p = jax.nn.softmax(s, axis=1)
    ref = jnp.einsum("bnm,bnf->bmf", p, V).reshape(-1, F_in)
    assert out.shape == (B * M, F_in)
    # Slightly loosened tolerance: pl.reciprocal(approx=True) in the softmax.
    assert jnp.allclose(out, ref, atol=5e-3, rtol=5e-3)

    print("KERNEL_OK")
</pallas_src>

<mosaic_0001>
module attributes {stable_mosaic.version = 11 : i64} {
  func.func @_node_attention_kernel(%arg0: i32, %arg1: memref<2x16x32xf32, #tpu.memory_space<vmem>>, %arg2: memref<32x8xf32, #tpu.memory_space<vmem>>, %arg3: memref<1x8xf32, #tpu.memory_space<vmem>>, %arg4: memref<2x256xf32, #tpu.memory_space<vmem>>) attributes {dimension_semantics = [#tpu.dimension_semantics<parallel>], iteration_bounds = array<i64: 1>, scalar_prefetch = 0 : i64, scratch_operands = 0 : i64, tpu.core_type = #tpu.core_type<tc>, window_params = [{transform_indices = @transform_0, window_bounds = array<i64: 2, 16, 32>}, {pipeline_mode = #tpu.pipeline_mode<synchronous>, transform_indices = @transform_1, window_bounds = array<i64: 32, 8>}, {pipeline_mode = #tpu.pipeline_mode<synchronous>, transform_indices = @transform_2, window_bounds = array<i64: 1, 8>}, {transform_indices = @transform_3, window_bounds = array<i64: 2, 256>}]} {
    %c0 = arith.constant 0 : index
    %c0_0 = arith.constant 0 : index
    %c0_1 = arith.constant 0 : index
    %0 = vector.load %arg1[%c0, %c0_0, %c0_1] : memref<2x16x32xf32, #tpu.memory_space<vmem>>, vector<2x16x32xf32>
    %1 = vector.shape_cast %0 : vector<2x16x32xf32> to vector<32x32xf32>
    %c0_2 = arith.constant 0 : index
    %c0_3 = arith.constant 0 : index
    %2 = vector.load %arg2[%c0_2, %c0_3] : memref<32x8xf32, #tpu.memory_space<vmem>>, vector<32x8xf32>
    %cst = arith.constant dense<0.000000e+00> : vector<32x8xf32>
    %3 = tpu.matmul %1, %2, %cst {dimension_numbers = #tpu.dot_dimension_numbers<[1], [0], [0], [1], [0, 0, 1, 1], [], []>} : vector<32x32xf32>, vector<32x8xf32>, vector<32x8xf32> -> vector<32x8xf32>
    %4 = vector.shape_cast %3 : vector<32x8xf32> to vector<2x16x8xf32>
    %c0_4 = arith.constant 0 : index
    %c0_5 = arith.constant 0 : index
    %5 = vector.load %arg3[%c0_4, %c0_5] : memref<1x8xf32, #tpu.memory_space<vmem>>, vector<1x8xf32>
    %6 = vector.shape_cast %5 : vector<1x8xf32> to vector<1x1x8xf32>
    %7 = vector.broadcast %6 : vector<1x1x8xf32> to vector<2x16x8xf32>
    %8 = arith.addf %4, %7 : vector<2x16x8xf32>
    %cst_6 = arith.constant dense<0xFF800000> : vector<2x8xf32>
    %9 = vector.multi_reduction <maximumf>, %8, %cst_6 [1] : vector<2x16x8xf32> to vector<2x8xf32>
    %10 = vector.shape_cast %9 : vector<2x8xf32> to vector<2x1x8xf32>
    %11 = vector.broadcast %10 : vector<2x1x8xf32> to vector<2x16x8xf32>
    %12 = arith.subf %8, %11 : vector<2x16x8xf32>
    %13 = math.exp %12 : vector<2x16x8xf32>
    %cst_7 = arith.constant dense<0.000000e+00> : vector<2x8xf32>
    %14 = vector.multi_reduction <add>, %13, %cst_7 [1] : vector<2x16x8xf32> to vector<2x8xf32>
    %15 = vector.shape_cast %14 : vector<2x8xf32> to vector<2x1x8xf32>
    %16 = tpu.reciprocal %15 {approx = true} : vector<2x1x8xf32> -> vector<2x1x8xf32>
    %17 = vector.broadcast %16 : vector<2x1x8xf32> to vector<2x16x8xf32>
    %18 = arith.mulf %13, %17 : vector<2x16x8xf32>
    %cst_8 = arith.constant dense<0.000000e+00> : vector<2x8x32xf32>
    %19 = tpu.matmul %18, %0, %cst_8 {dimension_numbers = #tpu.dot_dimension_numbers<[1], [1], [2], [2], [0, 0, 0, 2, 1, 2], [0], [0]>} : vector<2x16x8xf32>, vector<2x16x32xf32>, vector<2x8x32xf32> -> vector<2x8x32xf32>
    %20 = vector.shape_cast %19 : vector<2x8x32xf32> to vector<2x256xf32>
    %c0_9 = arith.constant 0 : index
    %c0_10 = arith.constant 0 : index
    %21 = vector.load %arg4[%c0_9, %c0_10] : memref<2x256xf32, #tpu.memory_space<vmem>>, vector<2x256xf32>
    tpu.vector_store %arg4[%c0_9, %c0_10], %20 {strides = array<i32>} : memref<2x256xf32, #tpu.memory_space<vmem>>, vector<2x256xf32>,
    return
  }
  func.func @transform_0(%arg0: i32) -> (i32, i32, i32) {
    %c0_i32 = arith.constant 0 : i32
    %c0_i32_0 = arith.constant 0 : i32
    %c0_i32_1 = arith.constant 0 : i32
    return %arg0, %c0_i32, %c0_i32_0 : i32, i32, i32
  }
  func.func @transform_1(%arg0: i32) -> (i32, i32) {
    %c0_i32 = arith.constant 0 : i32
    %c0_i32_0 = arith.constant 0 : i32
    %c0_i32_1 = arith.constant 0 : i32
    return %c0_i32, %c0_i32_0 : i32, i32
  }
  func.func @transform_2(%arg0: i32) -> (i32, i32) {
    %c0_i32 = arith.constant 0 : i32
    %c0_i32_0 = arith.constant 0 : i32
    %c0_i32_1 = arith.constant 0 : i32
    return %c0_i32, %c0_i32_0 : i32, i32
  }
  func.func @transform_3(%arg0: i32) -> (i32, i32) {
    %c0_i32 = arith.constant 0 : i32
    %c0_i32_0 = arith.constant 0 : i32
    return %arg0, %c0_i32 : i32, i32
  }
}

</mosaic_0001>

<llo_original>
// kernel: tpu_custom_call.1
$region0: #{tpu_custom_call.1}
  #allocation0 [shape = 'u32[]', space=smem, size = 0x4, offset = 0x4, fixed_abs, tag = 'smem constant byte address 0x4 - core index']
  #allocation1 [shape = 'u32[72,128]{1,0:T(1,128)}', space=vmem, size = 0x9000, scoped, tag = 'internal scratch']
  %s0 = inlined_call_operand.vmem [shape: f32[2,16,32], index: 0, kind: input, shape index: {}]
  %s1 = inlined_call_operand.vmem [shape: f32[32,8], index: 1, kind: input, shape index: {}]
  %s2 = inlined_call_operand.vmem [shape: f32[1,8], index: 2, kind: input, shape index: {}]
  %s3 = inlined_call_operand.hbm [shape: f32[2,256], index: 3, kind: output, shape index: {}]
  %s4 = sld [smem:[#allocation0]]
  $region22: #{tpu_custom_call.1} parent=0
    _
  %s6 = ssub.s32 1, %s4
  %s7 = scalar_select 0, %s6, %s4
  $region1: #{tpu_custom_call.1} parent=0
    #allocation2 [shape = 'u8[2048]{0}', space=vmem, size = 0x800, scoped, tag = 'output window, operand 0, single buffered']
    #allocation3 [shape = 's32[1]{0}', space=sflag, size = 0x4, scoped, tag = 'scoped memory for tpu_custom_call.1']
    %8 = vsyncpa [#allocation3], 0
    // Predicated region
    $region2: #{tpu_custom_call.1} parent=1 // pred_check
      _
    $region3: #{tpu_custom_call.1} parent=1 // pred_check_branch
      %10 = sbr.rel (0) target = $region5
    $region4: #{tpu_custom_call.1} parent=1 // pred_region
      _
    $region5: #{tpu_custom_call.1} parent=1 // pred_fallthru
      _
    // Predicated region
    $region6: #{tpu_custom_call.1} parent=1 // pred_check
      _
    $region7: #{tpu_custom_call.1} parent=1 // pred_check_branch
      %12 = sbr.rel (0) target = $region9
    $region8: #{tpu_custom_call.1} parent=1 // pred_region
      _
    $region9: #{tpu_custom_call.1} parent=1 // pred_fallthru
      _
    // Predicated region
    $region10: #{tpu_custom_call.1} parent=1 // pred_check
      _
    $region11: #{tpu_custom_call.1} parent=1 // pred_check_branch
      %14 = sbr.rel (0) target = $region13
    $region12: #{tpu_custom_call.1} parent=1 // pred_region
      _
    $region13: #{tpu_custom_call.1} parent=1 // pred_fallthru
      _
    %v15 = vld [vmem:[%s0] sm:$0xff]
    %v16 = vld [vmem:[%s0 + $0x8] sm:$0xff]
    %v17 = vld [vmem:[%s0 + $0x10] sm:$0xff]
    %v18 = vld [vmem:[%s0 + $0x18] sm:$0xff]
    %v19 = vld [vmem:[%s1] sm:$0xff]
    %v20 = vld [vmem:[%s1 + $0x8] sm:$0xff]
    %v21 = vld [vmem:[%s1 + $0x10] sm:$0xff]
    %v22 = vld [vmem:[%s1 + $0x18] sm:$0xff]
    %vm23 = vcmask 261120
    %v25 = vsel %vm23, %v15, 0
    %v28 = vsel %vm23, %v16, 0
    %v31 = vsel %vm23, %v17, 0
    %v34 = vsel %vm23, %v18, 0
    %36 = vmatpush.msra.mxu0 0.0
    %37 = vmatpush.msra.mxu0 0.0
    %38 = vmatpush.msra.mxu0 0.0
    %39 = vmatpush.msra.mxu0 0.0
    %40 = vmatpush.msra.mxu0 0.0
    %41 = vmatpush.msra.mxu0 0.0
    %42 = vmatpush.msra.mxu0 0.0
    %43 = vmatpush.msra.mxu0 0.0
    %44 = vmatpush.msra.mxu0 0.0
    %45 = vmatpush.msra.mxu0 0.0
    %46 = vmatpush.msra.mxu0 0.0
    %47 = vmatpush.msra.mxu0 0.0
    %48 = vmatpush.msra.mxu0 %v22
    %49 = vmatpush.msra.mxu0 %v21
    %50 = vmatpush.msra.mxu0 %v20
    %51 = vmatpush.msra.mxu0 %v19
    %52 = vmatmul.f32.gmra.mxu0 %v25
    %v53 = vpop.f32.mrf.mxu0
    %v54 = vadd.f32 0.0, %v53
    %55 = vmatmul.f32.gmra.mxu0 %v28
    %v56 = vpop.f32.mrf.mxu0
    %v57 = vadd.f32 0.0, %v56
    %58 = vmatmul.f32.gmra.mxu0 %v31
    %v59 = vpop.f32.mrf.mxu0
    %v60 = vadd.f32 0.0, %v59
    %61 = vmatmul.f32.gmra.mxu0 %v34
    %v62 = vpop.f32.mrf.mxu0
    %v63 = vadd.f32 0.0, %v62
    %64 = vdwg.mxu0
    %v65 = vld [vmem:[%s2] sm:$0x1]
    %v67 = vperm.slane %v65, 0
    %v69 = vadd.f32 %v54, %v67
    %v70 = vadd.f32 %v57, %v67
    %v71 = vadd.f32 %v60, %v67
    %v72 = vadd.f32 %v63, %v67
    %vm73 = vcmask 64512
    %v74 = vsel %vm73, %v69, -inf
    %v75 = vsel %vm73, %v70, -inf
    %v76 = vmax.f32 %v74, %v75
    %v77 = vrot.slane %v76, 4
    %v78 = vmax.f32 %v76, %v77
    %v79 = vrot.slane %v78, 2
    %v80 = vmax.f32 %v78, %v79
    %v81 = vrot.slane %v80, 1
    %v82 = vmax.f32 %v80, %v81
    %v83 = vsel %vm73, %v71, -inf
    %v84 = vsel %vm73, %v72, -inf
    %v85 = vmax.f32 %v83, %v84
    %v86 = vrot.slane %v85, 4
    %v87 = vmax.f32 %v85, %v86
    %v88 = vrot.slane %v87, 2
    %v89 = vmax.f32 %v87, %v88
    %v90 = vrot.slane %v89, 1
    %v91 = vmax.f32 %v89, %v90
    %v92 = vsub.f32 %v69, %v82
    %v93 = vsub.f32 %v70, %v82
    %v94 = vsub.f32 %v71, %v91
    %v95 = vsub.f32 %v72, %v91
    %v96 = vmul.f32 %v92, 1.442695
    %v97 = vpow.pop %v96
    %v98 = vmul.f32 %v93, 1.442695
    %v99 = vpow.pop %v98
    %v100 = vmul.f32 %v94, 1.442695
    %v101 = vpow.pop %v100
    %v102 = vmul.f32 %v95, 1.442695
    %v103 = vpow.pop %v102
    %v104 = vsel %vm73, %v97, 0.0
    %v105 = vsel %vm73, %v99, 0.0
    %v106 = vadd.f32 %v104, %v105
    %v107 = vrot.slane %v106, 4
    %v108 = vadd.f32 %v106, %v107
    %v109 = vrot.slane %v108, 2
    %v110 = vadd.f32 %v108, %v109
    %v111 = vrot.slane %v110, 1
    %v112 = vadd.f32 %v110, %v111
    %v113 = vsel %vm73, %v101, 0.0
    %v114 = vsel %vm73, %v103, 0.0
    %v115 = vadd.f32 %v113, %v114
    %v116 = vrot.slane %v115, 4
    %v117 = vadd.f32 %v115, %v116
    %v118 = vrot.slane %v117, 2
    %v119 = vadd.f32 %v117, %v118
    %v120 = vrot.slane %v119, 1
    %v121 = vadd.f32 %v119, %v120
    %v122 = vrcp.pop %v112
    %v123 = vrcp.pop %v121
    %v124 = vmul.f32 %v97, %v122
    %v125 = vmul.f32 %v99, %v122
    %v126 = vmul.f32 %v101, %v123
    %v127 = vmul.f32 %v103, %v123
    %128 = vxpose.xlu0.b32.start [1/16] %v124, 128
    %129 = vxpose.xlu0.b32.cont [2/16] %v125, 128
    %130 = vxpose.xlu0.b32.cont [3/16] 0.0, 128
    %131 = vxpose.xlu0.b32.cont [4/16] 0.0, 128
    %132 = vxpose.xlu0.b32.cont [5/16] 0.0, 128
    %133 = vxpose.xlu0.b32.cont [6/16] 0.0, 128
    %134 = vxpose.xlu0.b32.cont [7/16] 0.0, 128
    %135 = vxpose.xlu0.b32.cont [8/16] 0.0, 128
    %136 = vxpose.xlu0.b32.cont [9/16] 0.0, 128
    %137 = vxpose.xlu0.b32.cont [10/16] 0.0, 128
    %138 = vxpose.xlu0.b32.cont [11/16] 0.0, 128
    %139 = vxpose.xlu0.b32.cont [12/16] 0.0, 128
    %140 = vxpose.xlu0.b32.cont [13/16] 0.0, 128
    %141 = vxpose.xlu0.b32.cont [14/16] 0.0, 128
    %142 = vxpose.xlu0.b32.cont [15/16] 0.0, 128
    %143 = vxpose.xlu0.b32.end [16/16] 0.0, 128
    %v144 = vpop.trf.xlu0
    %v145 = vpop.trf.xlu0
    %v146 = vpop.trf.xlu0
    %v147 = vpop.trf.xlu0
    %v148 = vpop.trf.xlu0
    %v149 = vpop.trf.xlu0
    %v150 = vpop.trf.xlu0
    %v151 = vpop.trf.xlu0
    %v152 = vpop.trf.xlu0
    %v153 = vpop.trf.xlu0
    %v154 = vpop.trf.xlu0
    %v155 = vpop.trf.xlu0
    %v156 = vpop.trf.xlu0
    %v157 = vpop.trf.xlu0
    %v158 = vpop.trf.xlu0
    %v159 = vpop.trf.xlu0
    %vm160 = vcmask 130048
    %v162 = vsel %vm160, %v144, 0
    %164 = vmatpush.msra.mxu0 0.0
    %165 = vmatpush.msra.mxu0 0.0
    %166 = vmatpush.msra.mxu0 0.0
    %167 = vmatpush.msra.mxu0 0.0
    %168 = vmatpush.msra.mxu0 0.0
    %169 = vmatpush.msra.mxu0 0.0
    %170 = vmatpush.msra.mxu0 0.0
    %171 = vmatpush.msra.mxu0 0.0
    %172 = vmatpush.msra.mxu0 0.0
    %173 = vmatpush.msra.mxu0 0.0
    %174 = vmatpush.msra.mxu0 0.0
    %175 = vmatpush.msra.mxu0 0.0
    %176 = vmatpush.msra.mxu0 0.0
    %177 = vmatpush.msra.mxu0 0.0
    %178 = vmatpush.msra.mxu0 %v16
    %179 = vmatpush.msra.mxu0 %v15
    %180 = vmatmul.f32.gmra.mxu0 %v162
    %v181 = vpop.f32.mrf.mxu0
    %v182 = vadd.f32 0.0, %v181
    %183 = vdwg.mxu0
    %184 = vxpose.xlu0.b32.start [1/16] %v126, 128
    %185 = vxpose.xlu0.b32.cont [2/16] %v127, 128
    %186 = vxpose.xlu0.b32.cont [3/16] 0.0, 128
    %187 = vxpose.xlu0.b32.cont [4/16] 0.0, 128
    %188 = vxpose.xlu0.b32.cont [5/16] 0.0, 128
    %189 = vxpose.xlu0.b32.cont [6/16] 0.0, 128
    %190 = vxpose.xlu0.b32.cont [7/16] 0.0, 128
    %191 = vxpose.xlu0.b32.cont [8/16] 0.0, 128
    %192 = vxpose.xlu0.b32.cont [9/16] 0.0, 128
    %193 = vxpose.xlu0.b32.cont [10/16] 0.0, 128
    %194 = vxpose.xlu0.b32.cont [11/16] 0.0, 128
    %195 = vxpose.xlu0.b32.cont [12/16] 0.0, 128
    %196 = vxpose.xlu0.b32.cont [13/16] 0.0, 128
    %197 = vxpose.xlu0.b32.cont [14/16] 0.0, 128
    %198 = vxpose.xlu0.b32.cont [15/16] 0.0, 128
    %199 = vxpose.xlu0.b32.end [16/16] 0.0, 128
    %v200 = vpop.trf.xlu0
    %v201 = vpop.trf.xlu0
    %v202 = vpop.trf.xlu0
    %v203 = vpop.trf.xlu0
    %v204 = vpop.trf.xlu0
    %v205 = vpop.trf.xlu0
    %v206 = vpop.trf.xlu0
    %v207 = vpop.trf.xlu0
    %v208 = vpop.trf.xlu0
    %v209 = vpop.trf.xlu0
    %v210 = vpop.trf.xlu0
    %v211 = vpop.trf.xlu0
    %v212 = vpop.trf.xlu0
    %v213 = vpop.trf.xlu0
    %v214 = vpop.trf.xlu0
    %v215 = vpop.trf.xlu0
    %v217 = vsel %vm160, %v200, 0
    %219 = vmatpush.msra.mxu0 0.0
    %220 = vmatpush.msra.mxu0 0.0
    %221 = vmatpush.msra.mxu0 0.0
    %222 = vmatpush.msra.mxu0 0.0
    %223 = vmatpush.msra.mxu0 0.0
    %224 = vmatpush.msra.mxu0 0.0
    %225 = vmatpush.msra.mxu0 0.0
    %226 = vmatpush.msra.mxu0 0.0
    %227 = vmatpush.msra.mxu0 0.0
    %228 = vmatpush.msra.mxu0 0.0
    %229 = vmatpush.msra.mxu0 0.0
    %230 = vmatpush.msra.mxu0 0.0
    %231 = vmatpush.msra.mxu0 0.0
    %232 = vmatpush.msra.mxu0 0.0
    %233 = vmatpush.msra.mxu0 %v18
    %234 = vmatpush.msra.mxu0 %v17
    %235 = vmatmul.f32.gmra.mxu0 %v217
    %v236 = vpop.f32.mrf.mxu0
    %v237 = vadd.f32 0.0, %v236
    %238 = vdwg.mxu0
    %v239 = vrot.slane %v182, 4
    %vm240 = vcmask 1047556
    %v241 = vsel %vm240, 0.0, %v239
    %v243 = vunpack.c.l.s4 1983009808
    %v244 = vunpack.c.0.s8 %v243
    %v245 = vperm.slane %v182, %v244
    %v247 = vunpack.c.l.s4 1983009808
    %v248 = vunpack.c.0.s8 %v247
    %v249 = vperm.slane %v241, %v248
    %v250 = vrot.slane %v237, 4
    %v251 = vsel %vm240, 0.0, %v250
    %v253 = vunpack.c.l.s4 1983009808
    %v254 = vunpack.c.0.s8 %v253
    %v255 = vperm.slane %v237, %v254
    %v257 = vunpack.c.l.s4 1983009808
    %v258 = vunpack.c.0.s8 %v257
    %v259 = vperm.slane %v251, %v258
    %v260 = vrot.slane %v255, 4
    %v261 = vsel %vm240, %v260, %v245
    %v262 = vrot.slane %v245, 4
    %v263 = vsel %vm240, %v255, %v262
    %v265 = vunpack.c.l.s4 1934713408
    %v266 = vunpack.c.0.s8 %v265
    %v267 = vperm.slane %v261, %v266
    %v269 = vunpack.c.l.s4 1934713408
    %v270 = vunpack.c.0.s8 %v269
    %v271 = vperm.slane %v263, %v270
    %v272 = vrot.slane %v259, 4
    %v273 = vsel %vm240, %v272, %v249
    %v274 = vrot.slane %v249, 4
    %v275 = vsel %vm240, %v259, %v274
    %v277 = vunpack.c.l.s4 1934713408
    %v278 = vunpack.c.0.s8 %v277
    %v279 = vperm.slane %v273, %v278
    %v281 = vunpack.c.l.s4 1934713408
    %v282 = vunpack.c.0.s8 %v281
    %v283 = vperm.slane %v275, %v282
    %v284 = vrot.slane %v267, 4
    %v285 = vsel %vm240, 0.0, %v284
    %v286 = vrot.slane %v271, 4
    %v287 = vsel %vm240, 0.0, %v286
    %v288 = vrot.slane %v279, 4
    %v289 = vsel %vm240, 0.0, %v288
    %v290 = vrot.slane %v283, 4
    %v291 = vsel %vm240, 0.0, %v290
    %293 = vrot.lane.b32.xlu0 %v285, 32
    %v294 = vpop.permute.xlu0 %293
    %297 = vrot.lane.b32.xlu0 %v271, 64
    %v298 = vpop.permute.xlu0 %297
    %301 = vrot.lane.b32.xlu0 %v287, 96
    %v302 = vpop.permute.xlu0 %301
    %305 = vrot.lane.b32.xlu0 %v289, 32
    %v306 = vpop.permute.xlu0 %305
    %309 = vrot.lane.b32.xlu0 %v283, 64
    %v310 = vpop.permute.xlu0 %309
    %313 = vrot.lane.b32.xlu0 %v291, 96
    %v314 = vpop.permute.xlu0 %313
    %v316 = vsel %vm23, %v267, %v294
    %vm317 = vcmask 523264
    %v318 = vsel %vm317, %v316, %v298
    %vm319 = vcmask 785408
    %v320 = vsel %vm319, %v318, %v302
    %v321 = vsel %vm23, %v279, %v306
    %v322 = vsel %vm317, %v321, %v310
    %v323 = vsel %vm319, %v322, %v314
    %v326 = vrot.slane %v323, 6
    %vm327 = vcmask 1041408
    %v328 = vsel %vm327, %v320, %v326
    %330 = vst [vmem:[#allocation2] sm:$0xf] %v328
    // Predicated region
    $region14: #{tpu_custom_call.1} parent=1 // pred_check
      _
    $region15: #{tpu_custom_call.1} parent=1 // pred_check_branch
      %332 = sbr.rel (0) target = $region17
    $region16: #{tpu_custom_call.1} parent=1 // pred_region
      %334 = vsyncadd [#allocation3], 0
      %s336 = sshll.u32 [#allocation2], 4
      %s337 = int_to_ptr.vmem [resolvable:$true] %s336
      %s338 = sshll.u32 %s3, 4
      %s339 = int_to_ptr.hbm [resolvable:$true] %s338
      %341 = dma.vmem_to_hbm [thread:$0]  %s337, 64, %s339, [#allocation3]
    $region17: #{tpu_custom_call.1} parent=1 // pred_fallthru
      _
    // Predicated region
    $region18: #{tpu_custom_call.1} parent=1 // pred_check
      _
    $region19: #{tpu_custom_call.1} parent=1 // pred_check_branch
      %343 = sbr.rel (0) target = $region21
    $region20: #{tpu_custom_call.1} parent=1 // pred_region
      %345 = dma.done [#allocation3], 64
    $region21: #{tpu_custom_call.1} parent=1 // pred_fallthru
      _
    %346 = vsyncpa [#allocation3], 1

</llo_original>
